<compile_context>
chip_gen: v6e
topology: v6e:2x2x1
jax: 0.10.0
libtpu: 0.0.40
codegen_flags: <defaults>
</compile_context>

<pallas_src>
import jax
import jax.numpy as jnp
from jax.experimental import pallas as pl
from jax.experimental.pallas import tpu as pltpu

# SELU constants (match torch.nn.SELU)
_SELU_ALPHA = 1.6732632423543772848170429916717
_SELU_SCALE = 1.0507009873554804934193349852946

_HID = 16  # padded hidden width (multiple of 8, >= max hidden size 9)


def _selu_unscaled(v):
    # The outer _SELU_SCALE is folded into the following layer's weights.
    return jnp.where(v > 0, v, _SELU_ALPHA * (jnp.exp(jnp.minimum(v, 0.0)) - 1.0))


def mlp_kernel(x_ref, w_ref, b_ref, o_ref):
    F = x_ref.shape[0]
    x = x_ref[...]                      # (F, TB)  -- batch on lanes
    W = w_ref[...]                      # (4*HID, max(F, HID)) packed weight slab
    b = b_ref[...]                      # (4*HID, 1) packed bias slab

    # layer 1 + SELU (scale folded into layer-2 weights); pad rows stay 0.
    h = jnp.dot(W[0:_HID, 0:F], x, preferred_element_type=jnp.float32) + b[0:_HID]
    h = _selu_unscaled(h)                                              # (HID, TB)
    # layer 2 + SELU (scale folded into layer-3 weights)
    h = jnp.dot(W[_HID:2 * _HID, 0:_HID], h,
                preferred_element_type=jnp.float32) + b[_HID:2 * _HID]
    h = _selu_unscaled(h)                                              # (HID, TB)
    # layer 3 + SELU (scale folded into layer-4 weights)
    h = jnp.dot(W[2 * _HID:3 * _HID, 0:_HID], h,
                preferred_element_type=jnp.float32) + b[2 * _HID:3 * _HID]
    h = _selu_unscaled(h)                                              # (HID, TB)
    # layer 4 (only the single real output row) + ReLU
    h = jnp.dot(W[3 * _HID:3 * _HID + 1, 0:_HID], h,
                preferred_element_type=jnp.float32) + b[3 * _HID:3 * _HID + 1]
    o_ref[...] = jnp.maximum(h, 0.0).astype(o_ref.dtype)              # (1, TB)


def _pack_params(params, num_features):
    """Pack nn.Linear-style params into one weight slab + one bias slab.

    Row bands of 16 hold the four layers; SELU scale is folded into the
    weights of layers 2-4 (not the biases).  Pad entries are zero, which is
    exactly self-consistent with SELU(0) = 0.
    """
    wcol = max(num_features, _HID)
    s = jnp.float32(_SELU_SCALE)
    W = jnp.zeros((4 * _HID, wcol), jnp.float32)
    B = jnp.zeros((4 * _HID, 1), jnp.float32)
    W = W.at[0:9, 0:num_features].set(params["w1"])
    W = W.at[_HID:_HID + 7, 0:9].set(params["w2"] * s)
    W = W.at[2 * _HID:2 * _HID + 3, 0:7].set(params["w3"] * s)
    W = W.at[3 * _HID:3 * _HID + 1, 0:3].set(params["w4"] * s)
    B = B.at[0:9, 0].set(params["b1"])
    B = B.at[_HID:_HID + 7, 0].set(params["b2"])
    B = B.at[2 * _HID:2 * _HID + 3, 0].set(params["b3"])
    B = B.at[3 * _HID:3 * _HID + 1, 0].set(params["b4"])
    return W, B


def mlp_regressor(x, params, *, tb=32768):
    """x: (B, F) f32.  params: nn.Linear-style W (out,in), b (out,).  Returns (B, 1)."""
    B, F = x.shape
    Wslab, bslab = _pack_params(params, F)

    # (B, F) -> (F, B): batch on the lane axis.  Single relayout pass; in a
    # real pipeline keep activations in this layout outside the timed path.
    xT = x.T

    # Batch tiling.  TB must be a multiple of 128 or equal the full extent B.
    # No host-side padding: grid = cdiv(B, TB); ragged-last-tile lanes are
    # don't-care (no cross-sample coupling) and the output store is masked.
    if B <= 128:
        TB = B                       # tiny batch: one full-extent tile
    else:
        # At least 2 grid steps so v7x's two TensorCores both get work,
        # capped at `tb` (kept a multiple of 128).
        half = pl.cdiv(B, 2)
        TB = min(tb, pl.cdiv(half, 128) * 128)
    grid = (pl.cdiv(B, TB),)

    full = lambda a: pl.BlockSpec(a.shape, lambda i: (0, 0))

    out_t = pl.pallas_call(
        mlp_kernel,
        out_shape=jax.ShapeDtypeStruct((1, B), jnp.float32),
        grid=grid,
        in_specs=[
            pl.BlockSpec((F, TB), lambda i: (0, i)),   # activation tile (pipelined)
            full(Wslab),                               # packed weights (resident)
            full(bslab),                               # packed biases  (resident)
        ],
        out_specs=pl.BlockSpec((1, TB), lambda i: (0, i)),   # lane-dense output
        compiler_params=pltpu.CompilerParams(
            dimension_semantics=("parallel",),
            # Above v5e's 16 MiB scoped default, well under v7x's 64 MiB
            # physical VMEM; covers double-buffered tiles + (HID, TB) f32
            # temporaries at the default tb.  Raise if tb is pushed past ~128K.
            vmem_limit_bytes=32 * 1024 * 1024,
        ),
    )(xT, Wslab, bslab)

    return out_t.reshape(B, 1)          # layout-free (1,B) -> (B,1)


def init_params(key, num_features):
    """Deterministic init mirroring nn.Linear: W (out, in), b (out,)."""
    dims = [(num_features, 9), (9, 7), (7, 3), (3, 1)]
    params = {}
    for idx, (fan_in, fan_out) in enumerate(dims, start=1):
        key, kw, kb = jax.random.split(key, 3)
        bound = 1.0 / jnp.sqrt(fan_in)
        params[f"w{idx}"] = jax.random.uniform(
            kw, (fan_out, fan_in), jnp.float32, -bound, bound)
        params[f"b{idx}"] = jax.random.uniform(
            kb, (fan_out,), jnp.float32, -bound, bound)
    return params


def reference_forward(x, p):
    h = jax.nn.selu(x @ p["w1"].T + p["b1"])
    h = jax.nn.selu(h @ p["w2"].T + p["b2"])
    h = jax.nn.selu(h @ p["w3"].T + p["b3"])
    h = h @ p["w4"].T + p["b4"]
    return jnp.maximum(h, 0.0)


if __name__ == "__main__":
    num_features = 10  # diabetes dataset feature count
    batch = 8

    key = jax.random.PRNGKey(0)
    key, kx = jax.random.split(key)
    x = jax.random.normal(kx, (batch, num_features), jnp.float32)
    params = init_params(key, num_features)

    out = jax.block_until_ready(mlp_regressor(x, params))
    ref = reference_forward(x, params)
    assert out.shape == (batch, 1)
    assert jnp.allclose(out, ref, atol=1e-5, rtol=1e-5)

    # Exercise the multi-step grid + ragged last tile path (B=200 -> TB=128,
    # grid=2, second block extends past the batch edge).
    key, kx2 = jax.random.split(key)
    x2 = jax.random.normal(kx2, (200, num_features), jnp.float32)
    out2 = jax.block_until_ready(mlp_regressor(x2, params))
    ref2 = reference_forward(x2, params)
    assert out2.shape == (200, 1)
    assert jnp.allclose(out2, ref2, atol=1e-5, rtol=1e-5)

    print("KERNEL_OK")
</pallas_src>

<mosaic_0001>
module attributes {stable_mosaic.version = 11 : i64} {
  func.func @mlp_kernel(%arg0: i32, %arg1: memref<10x8xf32, #tpu.memory_space<vmem>>, %arg2: memref<64x16xf32, #tpu.memory_space<vmem>>, %arg3: memref<64x1xf32, #tpu.memory_space<vmem>>, %arg4: memref<1x8xf32, #tpu.memory_space<vmem>>) attributes {dimension_semantics = [#tpu.dimension_semantics<parallel>], iteration_bounds = array<i64: 1>, scalar_prefetch = 0 : i64, scratch_operands = 0 : i64, tpu.core_type = #tpu.core_type<tc>, window_params = [{transform_indices = @transform_0, window_bounds = array<i64: 10, 8>}, {pipeline_mode = #tpu.pipeline_mode<synchronous>, transform_indices = @transform_1, window_bounds = array<i64: 64, 16>}, {pipeline_mode = #tpu.pipeline_mode<synchronous>, transform_indices = @transform_2, window_bounds = array<i64: 64, 1>}, {transform_indices = @transform_3, window_bounds = array<i64: 1, 8>}]} {
    %c0 = arith.constant 0 : index
    %c0_0 = arith.constant 0 : index
    %0 = vector.load %arg1[%c0, %c0_0] : memref<10x8xf32, #tpu.memory_space<vmem>>, vector<10x8xf32>
    %c0_1 = arith.constant 0 : index
    %c0_2 = arith.constant 0 : index
    %1 = vector.load %arg2[%c0_1, %c0_2] : memref<64x16xf32, #tpu.memory_space<vmem>>, vector<64x16xf32>
    %c0_3 = arith.constant 0 : index
    %c0_4 = arith.constant 0 : index
    %2 = vector.load %arg3[%c0_3, %c0_4] : memref<64x1xf32, #tpu.memory_space<vmem>>, vector<64x1xf32>
    %3 = vector.extract_strided_slice %1 {offsets = [0, 0], sizes = [16, 10], strides = [1, 1]} : vector<64x16xf32> to vector<16x10xf32>
    %cst = arith.constant dense<0.000000e+00> : vector<16x8xf32>
    %4 = tpu.matmul %3, %0, %cst {dimension_numbers = #tpu.dot_dimension_numbers<[1], [0], [0], [1], [0, 0, 1, 1], [], []>} : vector<16x10xf32>, vector<10x8xf32>, vector<16x8xf32> -> vector<16x8xf32>
    %5 = vector.extract_strided_slice %2 {offsets = [0, 0], sizes = [16, 1], strides = [1, 1]} : vector<64x1xf32> to vector<16x1xf32>
    %6 = vector.broadcast %5 : vector<16x1xf32> to vector<16x8xf32>
    %7 = arith.addf %4, %6 : vector<16x8xf32>
    %cst_5 = arith.constant 0.000000e+00 : f32
    %8 = vector.broadcast %cst_5 : f32 to vector<16x8xf32>
    %9 = arith.cmpf ogt, %7, %8 : vector<16x8xf32>
    %cst_6 = arith.constant 0.000000e+00 : f32
    %10 = vector.broadcast %cst_6 : f32 to vector<16x8xf32>
    %11 = arith.minimumf %7, %10 : vector<16x8xf32>
    %12 = math.exp %11 : vector<16x8xf32>
    %cst_7 = arith.constant 1.000000e+00 : f32
    %13 = vector.broadcast %cst_7 : f32 to vector<16x8xf32>
    %14 = arith.subf %12, %13 : vector<16x8xf32>
    %cst_8 = arith.constant 1.67326319 : f32
    %15 = vector.broadcast %cst_8 : f32 to vector<16x8xf32>
    %16 = arith.mulf %15, %14 : vector<16x8xf32>
    %17 = arith.select %9, %7, %16 : vector<16x8xi1>, vector<16x8xf32>
    %18 = vector.extract_strided_slice %1 {offsets = [16, 0], sizes = [16, 16], strides = [1, 1]} : vector<64x16xf32> to vector<16x16xf32>
    %cst_9 = arith.constant dense<0.000000e+00> : vector<16x8xf32>
    %19 = tpu.matmul %18, %17, %cst_9 {dimension_numbers = #tpu.dot_dimension_numbers<[1], [0], [0], [1], [0, 0, 1, 1], [], []>} : vector<16x16xf32>, vector<16x8xf32>, vector<16x8xf32> -> vector<16x8xf32>
    %20 = vector.extract_strided_slice %2 {offsets = [16, 0], sizes = [16, 1], strides = [1, 1]} : vector<64x1xf32> to vector<16x1xf32>
    %21 = vector.broadcast %20 : vector<16x1xf32> to vector<16x8xf32>
    %22 = arith.addf %19, %21 : vector<16x8xf32>
    %cst_10 = arith.constant 0.000000e+00 : f32
    %23 = vector.broadcast %cst_10 : f32 to vector<16x8xf32>
    %24 = arith.cmpf ogt, %22, %23 : vector<16x8xf32>
    %cst_11 = arith.constant 0.000000e+00 : f32
    %25 = vector.broadcast %cst_11 : f32 to vector<16x8xf32>
    %26 = arith.minimumf %22, %25 : vector<16x8xf32>
    %27 = math.exp %26 : vector<16x8xf32>
    %cst_12 = arith.constant 1.000000e+00 : f32
    %28 = vector.broadcast %cst_12 : f32 to vector<16x8xf32>
    %29 = arith.subf %27, %28 : vector<16x8xf32>
    %cst_13 = arith.constant 1.67326319 : f32
    %30 = vector.broadcast %cst_13 : f32 to vector<16x8xf32>
    %31 = arith.mulf %30, %29 : vector<16x8xf32>
    %32 = arith.select %24, %22, %31 : vector<16x8xi1>, vector<16x8xf32>
    %33 = vector.extract_strided_slice %1 {offsets = [32, 0], sizes = [16, 16], strides = [1, 1]} : vector<64x16xf32> to vector<16x16xf32>
    %cst_14 = arith.constant dense<0.000000e+00> : vector<16x8xf32>
    %34 = tpu.matmul %33, %32, %cst_14 {dimension_numbers = #tpu.dot_dimension_numbers<[1], [0], [0], [1], [0, 0, 1, 1], [], []>} : vector<16x16xf32>, vector<16x8xf32>, vector<16x8xf32> -> vector<16x8xf32>
    %35 = vector.extract_strided_slice %2 {offsets = [32, 0], sizes = [16, 1], strides = [1, 1]} : vector<64x1xf32> to vector<16x1xf32>
    %36 = vector.broadcast %35 : vector<16x1xf32> to vector<16x8xf32>
    %37 = arith.addf %34, %36 : vector<16x8xf32>
    %cst_15 = arith.constant 0.000000e+00 : f32
    %38 = vector.broadcast %cst_15 : f32 to vector<16x8xf32>
    %39 = arith.cmpf ogt, %37, %38 : vector<16x8xf32>
    %cst_16 = arith.constant 0.000000e+00 : f32
    %40 = vector.broadcast %cst_16 : f32 to vector<16x8xf32>
    %41 = arith.minimumf %37, %40 : vector<16x8xf32>
    %42 = math.exp %41 : vector<16x8xf32>
    %cst_17 = arith.constant 1.000000e+00 : f32
    %43 = vector.broadcast %cst_17 : f32 to vector<16x8xf32>
    %44 = arith.subf %42, %43 : vector<16x8xf32>
    %cst_18 = arith.constant 1.67326319 : f32
    %45 = vector.broadcast %cst_18 : f32 to vector<16x8xf32>
    %46 = arith.mulf %45, %44 : vector<16x8xf32>
    %47 = arith.select %39, %37, %46 : vector<16x8xi1>, vector<16x8xf32>
    %48 = vector.extract_strided_slice %1 {offsets = [48, 0], sizes = [1, 16], strides = [1, 1]} : vector<64x16xf32> to vector<1x16xf32>
    %cst_19 = arith.constant dense<0.000000e+00> : vector<1x8xf32>
    %49 = tpu.matmul %48, %47, %cst_19 {dimension_numbers = #tpu.dot_dimension_numbers<[1], [0], [0], [1], [0, 0, 1, 1], [], []>} : vector<1x16xf32>, vector<16x8xf32>, vector<1x8xf32> -> vector<1x8xf32>
    %50 = vector.extract_strided_slice %2 {offsets = [48, 0], sizes = [1, 1], strides = [1, 1]} : vector<64x1xf32> to vector<1x1xf32>
    %51 = vector.broadcast %50 : vector<1x1xf32> to vector<1x8xf32>
    %52 = arith.addf %49, %51 : vector<1x8xf32>
    %cst_20 = arith.constant 0.000000e+00 : f32
    %53 = vector.broadcast %cst_20 : f32 to vector<1x8xf32>
    %54 = arith.maximumf %52, %53 : vector<1x8xf32>
    %c0_21 = arith.constant 0 : index
    %c0_22 = arith.constant 0 : index
    %55 = vector.load %arg4[%c0_21, %c0_22] : memref<1x8xf32, #tpu.memory_space<vmem>>, vector<1x8xf32>
    tpu.vector_store %arg4[%c0_21, %c0_22], %54 {strides = array<i32>} : memref<1x8xf32, #tpu.memory_space<vmem>>, vector<1x8xf32>,
    return
  }
  func.func @transform_0(%arg0: i32) -> (i32, i32) {
    %c0_i32 = arith.constant 0 : i32
    %c0_i32_0 = arith.constant 0 : i32
    return %c0_i32, %arg0 : i32, i32
  }
  func.func @transform_1(%arg0: i32) -> (i32, i32) {
    %c0_i32 = arith.constant 0 : i32
    %c0_i32_0 = arith.constant 0 : i32
    %c0_i32_1 = arith.constant 0 : i32
    return %c0_i32, %c0_i32_0 : i32, i32
  }
  func.func @transform_2(%arg0: i32) -> (i32, i32) {
    %c0_i32 = arith.constant 0 : i32
    %c0_i32_0 = arith.constant 0 : i32
    %c0_i32_1 = arith.constant 0 : i32
    return %c0_i32, %c0_i32_0 : i32, i32
  }
  func.func @transform_3(%arg0: i32) -> (i32, i32) {
    %c0_i32 = arith.constant 0 : i32
    %c0_i32_0 = arith.constant 0 : i32
    return %c0_i32, %arg0 : i32, i32
  }
}

</mosaic_0001>

<llo_original>
// kernel: tpu_custom_call.1
$region0: #{tpu_custom_call.1}
  #allocation0 [shape = 'u32[]', space=smem, size = 0x4, offset = 0x4, fixed_abs, tag = 'smem constant byte address 0x4 - core index']
  #allocation1 [shape = 'u32[144,128]{1,0:T(1,128)}', space=vmem, size = 0x12000, scoped, tag = 'internal scratch']
  %s0 = inlined_call_operand.vmem [shape: f32[10,8], index: 0, kind: input, shape index: {}]
  %s1 = inlined_call_operand.vmem [shape: f32[64,16], index: 1, kind: input, shape index: {}]
  %s2 = inlined_call_operand.vmem [shape: f32[64,1], index: 2, kind: input, shape index: {}]
  %s3 = inlined_call_operand.hbm [shape: f32[1,8], index: 3, kind: output, shape index: {}]
  %s4 = sld [smem:[#allocation0]]
  $region22: #{tpu_custom_call.1} parent=0
    _
  %s6 = ssub.s32 1, %s4
  %s7 = scalar_select 0, %s6, %s4
  $region1: #{tpu_custom_call.1} parent=0
    #allocation2 [shape = 'u8[512]{0}', space=vmem, size = 0x400, scoped, tag = 'output window, operand 0, single buffered']
    #allocation3 [shape = 's32[1]{0}', space=sflag, size = 0x4, scoped, tag = 'scoped memory for tpu_custom_call.1']
    %8 = vsyncpa [#allocation3], 0
    // Predicated region
    $region2: #{tpu_custom_call.1} parent=1 // pred_check
      _
    $region3: #{tpu_custom_call.1} parent=1 // pred_check_branch
      %10 = sbr.rel (0) target = $region5
    $region4: #{tpu_custom_call.1} parent=1 // pred_region
      _
    $region5: #{tpu_custom_call.1} parent=1 // pred_fallthru
      _
    // Predicated region
    $region6: #{tpu_custom_call.1} parent=1 // pred_check
      _
    $region7: #{tpu_custom_call.1} parent=1 // pred_check_branch
      %12 = sbr.rel (0) target = $region9
    $region8: #{tpu_custom_call.1} parent=1 // pred_region
      _
    $region9: #{tpu_custom_call.1} parent=1 // pred_fallthru
      _
    // Predicated region
    $region10: #{tpu_custom_call.1} parent=1 // pred_check
      _
    $region11: #{tpu_custom_call.1} parent=1 // pred_check_branch
      %14 = sbr.rel (0) target = $region13
    $region12: #{tpu_custom_call.1} parent=1 // pred_region
      _
    $region13: #{tpu_custom_call.1} parent=1 // pred_fallthru
      _
    %v15 = vld [vmem:[%s0] sm:$0xff]
    %v16 = vld [vmem:[%s0 + $0x8] sm:$0x3]
    %v17 = vld [vmem:[%s1] sm:$0xff]
    %v18 = vld [vmem:[%s1 + $0x8] sm:$0xff]
    %v19 = vld [vmem:[%s1 + $0x10] sm:$0xff]
    %v20 = vld [vmem:[%s1 + $0x18] sm:$0xff]
    %v21 = vld [vmem:[%s1 + $0x20] sm:$0xff]
    %v22 = vld [vmem:[%s1 + $0x28] sm:$0xff]
    %v23 = vld [vmem:[%s1 + $0x30] sm:$0xff]
    %v24 = vld [vmem:[%s2] sm:$0xff]
    %v25 = vld [vmem:[%s2 + $0x8] sm:$0xff]
    %v26 = vld [vmem:[%s2 + $0x10] sm:$0xff]
    %v27 = vld [vmem:[%s2 + $0x18] sm:$0xff]
    %v28 = vld [vmem:[%s2 + $0x20] sm:$0xff]
    %v29 = vld [vmem:[%s2 + $0x28] sm:$0xff]
    %v30 = vld [vmem:[%s2 + $0x30] sm:$0xff]
    %32 = vset.pattern.permute.xlu0 0
    %33 = vperm.xlu0 %32, %v24
    %v34 = vpop.permute.xlu0 %33
    %37 = vset.pattern.permute.xlu0 0
    %38 = vperm.xlu0 %37, %v25
    %v39 = vpop.permute.xlu0 %38
    %vm41 = vcmask 80896
    %v43 = vsel %vm41, %v17, 0
    %v46 = vsel %vm41, %v18, 0
    %vm48 = vcmask 1041408
    %v50 = vsel %vm48, %v16, 0
    %52 = vmatprep.subr.mxu0 0.0
    %53 = vmatpush1.msra.mxu0 0.0
    %54 = vmatprep.subr.mxu0 0.0
    %55 = vmatpush1.msra.mxu0 0.0
    %56 = vmatprep.subr.mxu0 0.0
    %57 = vmatpush1.msra.mxu0 0.0
    %58 = vmatprep.subr.mxu0 0.0
    %59 = vmatpush1.msra.mxu0 0.0
    %60 = vmatprep.subr.mxu0 0.0
    %61 = vmatpush1.msra.mxu0 0.0
    %62 = vmatprep.subr.mxu0 0.0
    %63 = vmatpush1.msra.mxu0 0.0
    %64 = vmatprep.subr.mxu0 0.0
    %65 = vmatpush1.msra.mxu0 0.0
    %66 = vmatprep.subr.mxu0 0.0
    %67 = vmatpush1.msra.mxu0 0.0
    %68 = vmatprep.subr.mxu0 0.0
    %69 = vmatpush1.msra.mxu0 0.0
    %70 = vmatprep.subr.mxu0 0.0
    %71 = vmatpush1.msra.mxu0 0.0
    %72 = vmatprep.subr.mxu0 0.0
    %73 = vmatpush1.msra.mxu0 0.0
    %74 = vmatprep.subr.mxu0 0.0
    %75 = vmatpush1.msra.mxu0 0.0
    %76 = vmatprep.subr.mxu0 0.0
    %77 = vmatpush1.msra.mxu0 0.0
    %78 = vmatprep.subr.mxu0 0.0
    %79 = vmatpush1.msra.mxu0 0.0
    %80 = vmatprep.subr.mxu0 0.0
    %81 = vmatpush1.msra.mxu0 %v50
    %82 = vmatprep.subr.mxu0 0.0
    %83 = vmatpush1.msra.mxu0 %v15
    %84 = vmatprep.subr.mxu0 0.0
    %85 = vmatpush2.msra.mxu0 0.0
    %86 = vmatprep.subr.mxu0 0.0
    %87 = vmatpush2.msra.mxu0 0.0
    %88 = vmatprep.subr.mxu0 0.0
    %89 = vmatpush2.msra.mxu0 0.0
    %90 = vmatprep.subr.mxu0 0.0
    %91 = vmatpush2.msra.mxu0 0.0
    %92 = vmatprep.subr.mxu0 0.0
    %93 = vmatpush2.msra.mxu0 0.0
    %94 = vmatprep.subr.mxu0 0.0
    %95 = vmatpush2.msra.mxu0 0.0
    %96 = vmatprep.subr.mxu0 0.0
    %97 = vmatpush2.msra.mxu0 0.0
    %98 = vmatprep.subr.mxu0 0.0
    %99 = vmatpush2.msra.mxu0 0.0
    %100 = vmatprep.subr.mxu0 0.0
    %101 = vmatpush2.msra.mxu0 0.0
    %102 = vmatprep.subr.mxu0 0.0
    %103 = vmatpush2.msra.mxu0 0.0
    %104 = vmatprep.subr.mxu0 0.0
    %105 = vmatpush2.msra.mxu0 0.0
    %106 = vmatprep.subr.mxu0 0.0
    %107 = vmatpush2.msra.mxu0 0.0
    %108 = vmatprep.subr.mxu0 0.0
    %109 = vmatpush2.msra.mxu0 0.0
    %110 = vmatprep.subr.mxu0 0.0
    %111 = vmatpush2.msra.mxu0 0.0
    %112 = vmatprep.subr.mxu0 0.0
    %113 = vmatpush2.msra.mxu0 0.0
    %114 = vmatprep.subr.mxu0 0.0
    %115 = vmatpush2.msra.mxu0 0.0
    %116 = vmatprep.mubr.f32.mxu0 0.0
    %117 = vmatmul.mubr.f32.gmra.mxu0 %v43
    %v118 = vpop.f32.mrf.mxu0
    %v119 = vadd.f32 %v34, %v118
    %v120 = vpop.f32.mrf.mxu0
    %121 = vmatprep.mubr.f32.mxu0 0.0
    %122 = vmatmul.mubr.f32.gmra.mxu0 %v46
    %v123 = vpop.f32.mrf.mxu0
    %v124 = vadd.f32 %v39, %v123
    %v125 = vpop.f32.mrf.mxu0
    %126 = vdwg.mxu0
    %vm127 = vcmp.gt.f32.partialorder %v119, 0.0
    %vm128 = vcmp.gt.f32.partialorder %v124, 0.0
    %v129 = vmin.f32 %v119, 0.0
    %v130 = vmin.f32 %v124, 0.0
    %v131 = vmul.f32 %v129, 1.442695
    %v132 = vpow.pop %v131
    %v133 = vmul.f32 %v130, 1.442695
    %v134 = vpow.pop %v133
    %v135 = vsub.f32 %v132, 1.0
    %v136 = vsub.f32 %v134, 1.0
    %v137 = vmul.f32 %v135, 1.6732632
    %v138 = vmul.f32 %v136, 1.6732632
    %v139 = vsel %vm127, %v119, %v137
    %v140 = vsel %vm128, %v124, %v138
    %142 = vset.pattern.permute.xlu0 0
    %143 = vperm.xlu0 %142, %v26
    %v144 = vpop.permute.xlu0 %143
    %147 = vset.pattern.permute.xlu0 0
    %148 = vperm.xlu0 %147, %v27
    %v149 = vpop.permute.xlu0 %148
    %vm151 = vcmask 130048
    %v153 = vsel %vm151, %v19, 0
    %v156 = vsel %vm151, %v20, 0
    %158 = vmatprep.subr.mxu0 0.0
    %159 = vmatpush1.msra.mxu0 0.0
    %160 = vmatprep.subr.mxu0 0.0
    %161 = vmatpush1.msra.mxu0 0.0
    %162 = vmatprep.subr.mxu0 0.0
    %163 = vmatpush1.msra.mxu0 0.0
    %164 = vmatprep.subr.mxu0 0.0
    %165 = vmatpush1.msra.mxu0 0.0
    %166 = vmatprep.subr.mxu0 0.0
    %167 = vmatpush1.msra.mxu0 0.0
    %168 = vmatprep.subr.mxu0 0.0
    %169 = vmatpush1.msra.mxu0 0.0
    %170 = vmatprep.subr.mxu0 0.0
    %171 = vmatpush1.msra.mxu0 0.0
    %172 = vmatprep.subr.mxu0 0.0
    %173 = vmatpush1.msra.mxu0 0.0
    %174 = vmatprep.subr.mxu0 0.0
    %175 = vmatpush1.msra.mxu0 0.0
    %176 = vmatprep.subr.mxu0 0.0
    %177 = vmatpush1.msra.mxu0 0.0
    %178 = vmatprep.subr.mxu0 0.0
    %179 = vmatpush1.msra.mxu0 0.0
    %180 = vmatprep.subr.mxu0 0.0
    %181 = vmatpush1.msra.mxu0 0.0
    %182 = vmatprep.subr.mxu0 0.0
    %183 = vmatpush1.msra.mxu0 0.0
    %184 = vmatprep.subr.mxu0 0.0
    %185 = vmatpush1.msra.mxu0 0.0
    %186 = vmatprep.subr.mxu0 0.0
    %187 = vmatpush1.msra.mxu0 %v140
    %188 = vmatprep.subr.mxu0 0.0
    %189 = vmatpush1.msra.mxu0 %v139
    %190 = vmatprep.subr.mxu0 0.0
    %191 = vmatpush2.msra.mxu0 0.0
    %192 = vmatprep.subr.mxu0 0.0
    %193 = vmatpush2.msra.mxu0 0.0
    %194 = vmatprep.subr.mxu0 0.0
    %195 = vmatpush2.msra.mxu0 0.0
    %196 = vmatprep.subr.mxu0 0.0
    %197 = vmatpush2.msra.mxu0 0.0
    %198 = vmatprep.subr.mxu0 0.0
    %199 = vmatpush2.msra.mxu0 0.0
    %200 = vmatprep.subr.mxu0 0.0
    %201 = vmatpush2.msra.mxu0 0.0
    %202 = vmatprep.subr.mxu0 0.0
    %203 = vmatpush2.msra.mxu0 0.0
    %204 = vmatprep.subr.mxu0 0.0
    %205 = vmatpush2.msra.mxu0 0.0
    %206 = vmatprep.subr.mxu0 0.0
    %207 = vmatpush2.msra.mxu0 0.0
    %208 = vmatprep.subr.mxu0 0.0
    %209 = vmatpush2.msra.mxu0 0.0
    %210 = vmatprep.subr.mxu0 0.0
    %211 = vmatpush2.msra.mxu0 0.0
    %212 = vmatprep.subr.mxu0 0.0
    %213 = vmatpush2.msra.mxu0 0.0
    %214 = vmatprep.subr.mxu0 0.0
    %215 = vmatpush2.msra.mxu0 0.0
    %216 = vmatprep.subr.mxu0 0.0
    %217 = vmatpush2.msra.mxu0 0.0
    %218 = vmatprep.subr.mxu0 0.0
    %219 = vmatpush2.msra.mxu0 0.0
    %220 = vmatprep.subr.mxu0 0.0
    %221 = vmatpush2.msra.mxu0 0.0
    %222 = vmatprep.mubr.f32.mxu0 0.0
    %223 = vmatmul.mubr.f32.gmra.mxu0 %v153
    %v224 = vpop.f32.mrf.mxu0
    %v225 = vadd.f32 %v144, %v224
    %v226 = vpop.f32.mrf.mxu0
    %227 = vmatprep.mubr.f32.mxu0 0.0
    %228 = vmatmul.mubr.f32.gmra.mxu0 %v156
    %v229 = vpop.f32.mrf.mxu0
    %v230 = vadd.f32 %v149, %v229
    %v231 = vpop.f32.mrf.mxu0
    %232 = vdwg.mxu0
    %vm233 = vcmp.gt.f32.partialorder %v225, 0.0
    %vm234 = vcmp.gt.f32.partialorder %v230, 0.0
    %v235 = vmin.f32 %v225, 0.0
    %v236 = vmin.f32 %v230, 0.0
    %v237 = vmul.f32 %v235, 1.442695
    %v238 = vpow.pop %v237
    %v239 = vmul.f32 %v236, 1.442695
    %v240 = vpow.pop %v239
    %v241 = vsub.f32 %v238, 1.0
    %v242 = vsub.f32 %v240, 1.0
    %v243 = vmul.f32 %v241, 1.6732632
    %v244 = vmul.f32 %v242, 1.6732632
    %v245 = vsel %vm233, %v225, %v243
    %v246 = vsel %vm234, %v230, %v244
    %248 = vset.pattern.permute.xlu0 0
    %249 = vperm.xlu0 %248, %v28
    %v250 = vpop.permute.xlu0 %249
    %253 = vset.pattern.permute.xlu0 0
    %254 = vperm.xlu0 %253, %v29
    %v255 = vpop.permute.xlu0 %254
    %v258 = vsel %vm151, %v21, 0
    %v261 = vsel %vm151, %v22, 0
    %263 = vmatprep.subr.mxu0 0.0
    %264 = vmatpush1.msra.mxu0 0.0
    %265 = vmatprep.subr.mxu0 0.0
    %266 = vmatpush1.msra.mxu0 0.0
    %267 = vmatprep.subr.mxu0 0.0
    %268 = vmatpush1.msra.mxu0 0.0
    %269 = vmatprep.subr.mxu0 0.0
    %270 = vmatpush1.msra.mxu0 0.0
    %271 = vmatprep.subr.mxu0 0.0
    %272 = vmatpush1.msra.mxu0 0.0
    %273 = vmatprep.subr.mxu0 0.0
    %274 = vmatpush1.msra.mxu0 0.0
    %275 = vmatprep.subr.mxu0 0.0
    %276 = vmatpush1.msra.mxu0 0.0
    %277 = vmatprep.subr.mxu0 0.0
    %278 = vmatpush1.msra.mxu0 0.0
    %279 = vmatprep.subr.mxu0 0.0
    %280 = vmatpush1.msra.mxu0 0.0
    %281 = vmatprep.subr.mxu0 0.0
    %282 = vmatpush1.msra.mxu0 0.0
    %283 = vmatprep.subr.mxu0 0.0
    %284 = vmatpush1.msra.mxu0 0.0
    %285 = vmatprep.subr.mxu0 0.0
    %286 = vmatpush1.msra.mxu0 0.0
    %287 = vmatprep.subr.mxu0 0.0
    %288 = vmatpush1.msra.mxu0 0.0
    %289 = vmatprep.subr.mxu0 0.0
    %290 = vmatpush1.msra.mxu0 0.0
    %291 = vmatprep.subr.mxu0 0.0
    %292 = vmatpush1.msra.mxu0 %v246
    %293 = vmatprep.subr.mxu0 0.0
    %294 = vmatpush1.msra.mxu0 %v245
    %295 = vmatprep.subr.mxu0 0.0
    %296 = vmatpush2.msra.mxu0 0.0
    %297 = vmatprep.subr.mxu0 0.0
    %298 = vmatpush2.msra.mxu0 0.0
    %299 = vmatprep.subr.mxu0 0.0
    %300 = vmatpush2.msra.mxu0 0.0
    %301 = vmatprep.subr.mxu0 0.0
    %302 = vmatpush2.msra.mxu0 0.0
    %303 = vmatprep.subr.mxu0 0.0
    %304 = vmatpush2.msra.mxu0 0.0
    %305 = vmatprep.subr.mxu0 0.0
    %306 = vmatpush2.msra.mxu0 0.0
    %307 = vmatprep.subr.mxu0 0.0
    %308 = vmatpush2.msra.mxu0 0.0
    %309 = vmatprep.subr.mxu0 0.0
    %310 = vmatpush2.msra.mxu0 0.0
    %311 = vmatprep.subr.mxu0 0.0
    %312 = vmatpush2.msra.mxu0 0.0
    %313 = vmatprep.subr.mxu0 0.0
    %314 = vmatpush2.msra.mxu0 0.0
    %315 = vmatprep.subr.mxu0 0.0
    %316 = vmatpush2.msra.mxu0 0.0
    %317 = vmatprep.subr.mxu0 0.0
    %318 = vmatpush2.msra.mxu0 0.0
    %319 = vmatprep.subr.mxu0 0.0
    %320 = vmatpush2.msra.mxu0 0.0
    %321 = vmatprep.subr.mxu0 0.0
    %322 = vmatpush2.msra.mxu0 0.0
    %323 = vmatprep.subr.mxu0 0.0
    %324 = vmatpush2.msra.mxu0 0.0
    %325 = vmatprep.subr.mxu0 0.0
    %326 = vmatpush2.msra.mxu0 0.0
    %327 = vmatprep.mubr.f32.mxu0 0.0
    %328 = vmatmul.mubr.f32.gmra.mxu0 %v258
    %v329 = vpop.f32.mrf.mxu0
    %v330 = vadd.f32 %v250, %v329
    %v331 = vpop.f32.mrf.mxu0
    %332 = vmatprep.mubr.f32.mxu0 0.0
    %333 = vmatmul.mubr.f32.gmra.mxu0 %v261
    %v334 = vpop.f32.mrf.mxu0
    %v335 = vadd.f32 %v255, %v334
    %v336 = vpop.f32.mrf.mxu0
    %337 = vdwg.mxu0
    %vm338 = vcmp.gt.f32.partialorder %v330, 0.0
    %vm339 = vcmp.gt.f32.partialorder %v335, 0.0
    %v340 = vmin.f32 %v330, 0.0
    %v341 = vmin.f32 %v335, 0.0
    %v342 = vmul.f32 %v340, 1.442695
    %v343 = vpow.pop %v342
    %v344 = vmul.f32 %v341, 1.442695
    %v345 = vpow.pop %v344
    %v346 = vsub.f32 %v343, 1.0
    %v347 = vsub.f32 %v345, 1.0
    %v348 = vmul.f32 %v346, 1.6732632
    %v349 = vmul.f32 %v347, 1.6732632
    %v350 = vsel %vm338, %v330, %v348
    %v351 = vsel %vm339, %v335, %v349
    %353 = vset.pattern.permute.xlu0 0
    %354 = vperm.xlu0 %353, %v30
    %v355 = vpop.permute.xlu0 %354
    %v358 = vsel %vm151, %v23, 0
    %360 = vmatprep.subr.mxu0 0.0
    %361 = vmatpush1.msra.mxu0 0.0
    %362 = vmatprep.subr.mxu0 0.0
    %363 = vmatpush1.msra.mxu0 0.0
    %364 = vmatprep.subr.mxu0 0.0
    %365 = vmatpush1.msra.mxu0 0.0
    %366 = vmatprep.subr.mxu0 0.0
    %367 = vmatpush1.msra.mxu0 0.0
    %368 = vmatprep.subr.mxu0 0.0
    %369 = vmatpush1.msra.mxu0 0.0
    %370 = vmatprep.subr.mxu0 0.0
    %371 = vmatpush1.msra.mxu0 0.0
    %372 = vmatprep.subr.mxu0 0.0
    %373 = vmatpush1.msra.mxu0 0.0
    %374 = vmatprep.subr.mxu0 0.0
    %375 = vmatpush1.msra.mxu0 0.0
    %376 = vmatprep.subr.mxu0 0.0
    %377 = vmatpush1.msra.mxu0 0.0
    %378 = vmatprep.subr.mxu0 0.0
    %379 = vmatpush1.msra.mxu0 0.0
    %380 = vmatprep.subr.mxu0 0.0
    %381 = vmatpush1.msra.mxu0 0.0
    %382 = vmatprep.subr.mxu0 0.0
    %383 = vmatpush1.msra.mxu0 0.0
    %384 = vmatprep.subr.mxu0 0.0
    %385 = vmatpush1.msra.mxu0 0.0
    %386 = vmatprep.subr.mxu0 0.0
    %387 = vmatpush1.msra.mxu0 0.0
    %388 = vmatprep.subr.mxu0 0.0
    %389 = vmatpush1.msra.mxu0 %v351
    %390 = vmatprep.subr.mxu0 0.0
    %391 = vmatpush1.msra.mxu0 %v350
    %392 = vmatprep.subr.mxu0 0.0
    %393 = vmatpush2.msra.mxu0 0.0
    %394 = vmatprep.subr.mxu0 0.0
    %395 = vmatpush2.msra.mxu0 0.0
    %396 = vmatprep.subr.mxu0 0.0
    %397 = vmatpush2.msra.mxu0 0.0
    %398 = vmatprep.subr.mxu0 0.0
    %399 = vmatpush2.msra.mxu0 0.0
    %400 = vmatprep.subr.mxu0 0.0
    %401 = vmatpush2.msra.mxu0 0.0
    %402 = vmatprep.subr.mxu0 0.0
    %403 = vmatpush2.msra.mxu0 0.0
    %404 = vmatprep.subr.mxu0 0.0
    %405 = vmatpush2.msra.mxu0 0.0
    %406 = vmatprep.subr.mxu0 0.0
    %407 = vmatpush2.msra.mxu0 0.0
    %408 = vmatprep.subr.mxu0 0.0
    %409 = vmatpush2.msra.mxu0 0.0
    %410 = vmatprep.subr.mxu0 0.0
    %411 = vmatpush2.msra.mxu0 0.0
    %412 = vmatprep.subr.mxu0 0.0
    %413 = vmatpush2.msra.mxu0 0.0
    %414 = vmatprep.subr.mxu0 0.0
    %415 = vmatpush2.msra.mxu0 0.0
    %416 = vmatprep.subr.mxu0 0.0
    %417 = vmatpush2.msra.mxu0 0.0
    %418 = vmatprep.subr.mxu0 0.0
    %419 = vmatpush2.msra.mxu0 0.0
    %420 = vmatprep.subr.mxu0 0.0
    %421 = vmatpush2.msra.mxu0 0.0
    %422 = vmatprep.subr.mxu0 0.0
    %423 = vmatpush2.msra.mxu0 0.0
    %424 = vmatprep.mubr.f32.mxu0 0.0
    %425 = vmatmul.mubr.f32.gmra.mxu0 %v358
    %v426 = vpop.f32.mrf.mxu0
    %v427 = vadd.f32 %v355, %v426
    %v428 = vpop.f32.mrf.mxu0
    %429 = vdwg.mxu0
    %v430 = vmax.f32 %v427, 0.0
    %vm431 = vcmask 57344
    %432 = vst.msk [vmem:[#allocation2] sm:$0x1] %vm431, %v430
    // Predicated region
    $region14: #{tpu_custom_call.1} parent=1 // pred_check
      _
    $region15: #{tpu_custom_call.1} parent=1 // pred_check_branch
      %434 = sbr.rel (0) target = $region17
    $region16: #{tpu_custom_call.1} parent=1 // pred_region
      %s436 = ssub.s32 16, 16
      %437 = vsyncadd [#allocation3], %s436
      %s439 = sshll.u32 [#allocation2], 4
      %s440 = int_to_ptr.vmem [resolvable:$true] %s439
      %442 = dma.vmem_to_hbm [thread:$0]  %s440, 16, %s3, [#allocation3]
    $region17: #{tpu_custom_call.1} parent=1 // pred_fallthru
      _
    // Predicated region
    $region18: #{tpu_custom_call.1} parent=1 // pred_check
      _
    $region19: #{tpu_custom_call.1} parent=1 // pred_check_branch
      %444 = sbr.rel (0) target = $region21
    $region20: #{tpu_custom_call.1} parent=1 // pred_region
      %445 = dma.done [#allocation3], 16
    $region21: #{tpu_custom_call.1} parent=1 // pred_fallthru
      _
    %446 = vsyncpa [#allocation3], 1

</llo_original>
